<compile_context>
chip_gen: v7x
topology: tpu7x:2x2x1
jax: 0.10.0
libtpu: 0.0.40
codegen_flags: <defaults>
</compile_context>

<pallas_src>
import numpy as np
import jax
import jax.numpy as jnp
from jax import lax
from jax.experimental import pallas as pl
from jax.experimental.pallas import tpu as pltpu


# --------------------------------------------------------------------------
# Plain-python / numpy replication of the module's __init__ glue (parameter
# shapes, masks, fixed constants, sample covariance).  Deterministic, no files.
# --------------------------------------------------------------------------
def _symmetric_dict(d):
    for (i, j), c in list(d.items()):
        d[(j, i)] = c
    return d


def _exclusive_dicts(dict_a, dict_b):
    for key, value in dict_a.items():
        if value == 0:
            continue
        dict_b[key] = 0
    return dict_b


def _default_settings(lambda_y, beta, psi, theta, alpha, nu, latent, observed):
    lambda_y = {} if lambda_y is None else dict(lambda_y)
    beta = {} if beta is None else dict(beta)
    psi = {} if psi is None else dict(psi)
    theta = {} if theta is None else dict(theta)
    if alpha is None:
        alpha = {name: 0.0 for name in latent}
    if nu is None:
        nu = {}
    theta = _symmetric_dict(theta)
    psi = _exclusive_dicts(beta, psi)
    beta = _exclusive_dicts(psi, beta)
    psi = _symmetric_dict(psi)
    for name in latent:
        psi.setdefault((name, name), 1.0)
    for name in observed:
        theta.setdefault((name, name), float("nan"))
        nu.setdefault(name, float("nan"))
    return lambda_y, beta, psi, theta, alpha, nu


def _convert_indices(dictionary, shape, mapping):
    mask = np.ones(shape, dtype=bool)
    fixed = np.zeros(shape, dtype=np.float64)
    for key, constant in dictionary.items():
        if isinstance(key, tuple):
            key = (mapping[key[0]], mapping[key[1]])
        else:
            key = mapping[key]
        if not constant == constant:  # NaN -> free parameter
            mask[key] = False
        else:
            fixed[key] = constant
    return mask, fixed


def build_sem(observed, latent, data, *, lambda_y=None, beta=None, psi=None,
              theta=None, biased_cov=True):
    """Replicates SEM.__init__ for the non-FIML case (alpha=nu=None, no NaNs)."""
    lambda_y, beta, psi, theta, _alpha, _nu = _default_settings(
        lambda_y, beta, psi, theta, None, None, latent, observed)

    n_obs, n_lat = len(observed), len(latent)
    mapping = {x: i for i, x in enumerate(observed)}
    mapping.update({x: i for i, x in enumerate(latent)})

    n = data.shape[0]
    cov_unbiased = np.cov(data, rowvar=False, ddof=1)
    scale = (n - 1.0) / n if biased_cov else 1.0
    sample_cov = cov_unbiased * scale if biased_cov else cov_unbiased

    # _get_initialized_parameter (only the variables used in the non-FIML path)
    params = {
        "lambda_y": np.ones((n_obs, n_lat), np.float64),
        "beta": np.zeros((n_lat, n_lat), np.float64),
        "psi": np.eye(n_lat, dtype=np.float64),
        "theta": np.clip((np.abs(cov_unbiased) * scale / 2.0) * np.eye(n_obs),
                         0.1, None),
    }

    specs = {"lambda_y": lambda_y, "beta": beta, "psi": psi, "theta": theta}
    masks, fixeds, free = {}, {}, {}
    for name, fixed_dict in specs.items():
        if name in ("psi", "theta"):
            for (na, nb), value in list(fixed_dict.items()):
                if value == value:
                    continue
                ra, rb = mapping[na], mapping[nb]
                if ra <= rb:
                    continue
                fixed_dict[(na, nb)] = 0.0
                params[name][rb, ra] *= 2
        mask, fixedm = _convert_indices(fixed_dict, params[name].shape, mapping)
        masks[name], fixeds[name] = mask, fixedm
        free[name] = int((~mask).sum())

    return dict(params=params, masks=masks, fixeds=fixeds,
                sample_cov=sample_cov, n_obs=n_obs, n_lat=n_lat,
                cfa=(free["beta"] == 0), free=free)


# --------------------------------------------------------------------------
# Padding helpers (used once at build time; results stay device-resident)
# --------------------------------------------------------------------------
def _pad_dim(model):
    # f32 sublane minimum is 8; lane dim equals the full (padded) array dim so
    # any multiple of 8 satisfies the BlockSpec divisibility rule.
    return max(8, -(-max(model["n_obs"], model["n_lat"]) // 8) * 8)


def _pad_sq(x, p, fill=0.0):
    out = np.full((p, p), fill, np.float32)
    out[:x.shape[0], :x.shape[1]] = np.asarray(x, np.float64).astype(np.float32)
    return out


# --------------------------------------------------------------------------
# Pallas kernel + jitted forward
# --------------------------------------------------------------------------
def make_sem_forward(model, batch):
    assert model["cfa"], "non-CFA beta path not exercised in this config"
    # TODO(synk): FIML / non-CFA (inverse(I - beta)) branch and missing-data
    # pattern loop are not implemented here (not exercised by this config).
    n = model["n_obs"]
    P = _pad_dim(model)

    # Static per-matrix constants, folded into the kernel:
    #   where(mask, fixed, param) == fix + free * param   with
    #   fix = fixed*mask, free = (~mask).float
    def fix_free(name):
        mask = model["masks"][name]
        fixed = model["fixeds"][name]
        return (_pad_sq(np.where(mask, fixed, 0.0), P),
                _pad_sq((~mask).astype(np.float64), P))

    lam_fix, lam_free = fix_free("lambda_y")
    psi_fix, psi_free = fix_free("psi")
    th_fix, th_free = fix_free("theta")
    eye_lat = _pad_sq(np.eye(model["n_lat"]), P)
    consts = jnp.asarray(np.stack(
        [lam_fix, lam_free, psi_fix, psi_free, th_fix, th_free, eye_lat]))

    sample_cov = jnp.asarray(model["sample_cov"], jnp.float32)

    # Several parameter sets per kernel step (amortize ~0.35 us/step overhead).
    bsub = 1
    for cand in range(min(batch, 16), 0, -1):
        if batch % cand == 0:
            bsub = cand
            break
    grid = (batch // bsub,)

    def sigma_kernel(const_ref, lam_ref, psi_ref, th_ref, sigma_ref):
        lam_fx, lam_fr = const_ref[0], const_ref[1]
        psi_fx, psi_fr = const_ref[2], const_ref[3]
        th_fx, th_fr = const_ref[4], const_ref[5]
        eye = const_ref[6]

        for i in range(bsub):  # static unroll over per-step parameter sets
            # get(): torch.where(mask, fixed, param)  ==  fix + free * param
            lam = lam_fx + lam_fr * lam_ref[i]
            psi = psi_fx + psi_fr * psi_ref[i]
            th = th_fx + th_fr * th_ref[i]

            # get('psi'): abs on the diagonal (symmetrization folded below).
            psi = psi * (1.0 - eye) + jnp.abs(psi) * eye
            # get('theta'): abs (symmetrization folded below).
            th = jnp.abs(th)

            # sigma = lambda_y @ psi @ lambda_y.T + theta
            # lambda_y.T is folded into the MXU feed (rhs-transposed dot).
            tmp = jnp.dot(lam, psi, preferred_element_type=jnp.float32)
            sigma = lax.dot_general(
                tmp, lam, dimension_numbers=(((1,), (1,)), ((), ())),
                preferred_element_type=jnp.float32) + th

            # Single symmetrization covers psi, theta and fp asymmetry.
            sigma_ref[i] = (sigma + sigma.T) * 0.5

    const_spec = pl.BlockSpec((7, P, P), lambda b: (0, 0, 0))
    param_spec = pl.BlockSpec((bsub, P, P), lambda b: (b, 0, 0))

    sigma_call = pl.pallas_call(
        sigma_kernel,
        out_shape=jax.ShapeDtypeStruct((batch, P, P), jnp.float32),
        grid=grid,
        in_specs=[const_spec, param_spec, param_spec, param_spec],
        out_specs=param_spec,
        compiler_params=pltpu.CompilerParams(
            dimension_semantics=("arbitrary",)),
        cost_estimate=pl.CostEstimate(
            flops=batch * 2 * (2 * P ** 3),
            bytes_accessed=(7 + 4 * batch) * P * P * 4,
            transcendentals=0),
    )

    @jax.jit
    def forward(lam_p, psi_p, theta_p):
        sigma_pad = sigma_call(consts, lam_p, psi_p, theta_p)
        sigma = sigma_pad[:, :n, :n]  # slice BEFORE the factorization

        # TODO(synk): Cholesky / cholesky_solve / log-det / trace are sequential
        # triangular algorithms with no clean Pallas equivalent; computed in
        # XLA inside the same jit.
        def loss_tail(s):
            L = jnp.linalg.cholesky(s)
            logdet = 2.0 * jnp.sum(jnp.log(jnp.diagonal(L)))
            x = jax.scipy.linalg.cho_solve((L, True), sample_cov)
            return logdet + jnp.trace(x)

        return sigma, jax.vmap(loss_tail)(sigma)

    return forward


# --------------------------------------------------------------------------
# float64 numpy reference (mirrors torch semantics) for a correctness check
# --------------------------------------------------------------------------
def _ref_get(name, model, params):
    m = np.where(model["masks"][name], model["fixeds"][name], params[name])
    if name.startswith("theta"):
        m = np.abs(m)
    if name.startswith(("psi", "theta")):
        m = (m + m.T) / 2
    if name.startswith("psi"):
        eye = np.eye(m.shape[0])
        m = m * (1 - eye) + np.abs(m) * eye
    return m


def reference_forward(model, params):
    psi = _ref_get("psi", model, params)
    lam = _ref_get("lambda_y", model, params)
    th = _ref_get("theta", model, params)
    sigma = lam @ psi @ lam.T + th
    sigma = (sigma + sigma.T) / 2
    L = np.linalg.cholesky(sigma)
    logdet = 2.0 * np.sum(np.log(np.diag(L)))
    loss = logdet + np.trace(np.linalg.solve(sigma, model["sample_cov"]))
    return sigma, loss


# --------------------------------------------------------------------------
if __name__ == "__main__":
    # Small deterministic synthetic data: 2-factor model, 6 observed variables.
    key = jax.random.PRNGKey(0)
    k1, k2, k3, k4, k5 = jax.random.split(key, 5)
    n_samples = 200
    factors = jax.random.normal(k1, (n_samples, 2), dtype=jnp.float32)
    loadings = jnp.array([[1.0, 0.8, 0.7, 0.0, 0.0, 0.0],
                          [0.0, 0.0, 0.0, 1.0, 0.9, 0.6]], dtype=jnp.float32)
    noise = 0.5 * jax.random.normal(k2, (n_samples, 6), dtype=jnp.float32)
    data = np.asarray(factors @ loadings + noise, dtype=np.float64)

    observed = [f"x{i + 1}" for i in range(6)]
    latent = ["f1", "f2"]
    nan = float("nan")
    lambda_spec = {("x1", "f1"): 1.0, ("x2", "f1"): nan, ("x3", "f1"): nan,
                   ("x4", "f2"): 1.0, ("x5", "f2"): nan, ("x6", "f2"): nan}
    psi_spec = {("f1", "f2"): nan}  # free latent covariance

    model = build_sem(observed, latent, data,
                      lambda_y=lambda_spec, psi=psi_spec, biased_cov=True)
    P = _pad_dim(model)

    # Two parameter sets on the batched axis: init params and a perturbed copy
    # (as would occur during fit()).
    base = model["params"]
    pert = {
        "lambda_y": base["lambda_y"] + 0.02 * np.asarray(
            jax.random.normal(k3, base["lambda_y"].shape), np.float64),
        "psi": base["psi"] + 0.02 * np.asarray(
            jax.random.normal(k4, base["psi"].shape), np.float64),
        "theta": base["theta"] + 0.02 * np.asarray(
            jax.random.normal(k5, base["theta"].shape), np.float64),
    }
    param_sets = [base, pert]
    batch = len(param_sets)

    # Padded, stacked, device-resident parameters (hoisted out of the forward).
    lam_b = jnp.asarray(np.stack([_pad_sq(p["lambda_y"], P) for p in param_sets]))
    psi_b = jnp.asarray(np.stack([_pad_sq(p["psi"], P) for p in param_sets]))
    th_b = jnp.asarray(np.stack([_pad_sq(p["theta"], P) for p in param_sets]))

    forward = make_sem_forward(model, batch)
    sigma, loss = forward(lam_b, psi_b, th_b)
    sigma = jax.block_until_ready(sigma)
    loss = jax.block_until_ready(loss)

    for b, params in enumerate(param_sets):
        sigma_ref, loss_ref = reference_forward(model, params)
        assert np.allclose(np.asarray(sigma[b]), sigma_ref,
                           rtol=1e-4, atol=1e-4), f"sigma mismatch (batch {b})"
        assert np.allclose(float(loss[b]), loss_ref,
                           rtol=1e-3, atol=1e-3), f"loss mismatch (batch {b})"
        assert np.isfinite(float(loss[b]))

    print("KERNEL_OK")
</pallas_src>

<mosaic_0001>
module attributes {stable_mosaic.version = 11 : i64} {
  func.func @sigma_kernel(%arg0: i32, %arg1: memref<7x8x8xf32, #tpu.memory_space<vmem>>, %arg2: memref<2x8x8xf32, #tpu.memory_space<vmem>>, %arg3: memref<2x8x8xf32, #tpu.memory_space<vmem>>, %arg4: memref<2x8x8xf32, #tpu.memory_space<vmem>>, %arg5: memref<2x8x8xf32, #tpu.memory_space<vmem>>) attributes {dimension_semantics = [#tpu.dimension_semantics<arbitrary>], iteration_bounds = array<i64: 1>, scalar_prefetch = 0 : i64, scratch_operands = 0 : i64, tpu.core_type = #tpu.core_type<tc>, window_params = [{pipeline_mode = #tpu.pipeline_mode<synchronous>, transform_indices = @transform_0, window_bounds = array<i64: 7, 8, 8>}, {transform_indices = @transform_1, window_bounds = array<i64: 2, 8, 8>}, {transform_indices = @transform_2, window_bounds = array<i64: 2, 8, 8>}, {transform_indices = @transform_3, window_bounds = array<i64: 2, 8, 8>}, {transform_indices = @transform_4, window_bounds = array<i64: 2, 8, 8>}]} {
    %c0 = arith.constant 0 : index
    %c0_0 = arith.constant 0 : index
    %c0_1 = arith.constant 0 : index
    %0 = vector.load %arg1[%c0, %c0_0, %c0_1] : memref<7x8x8xf32, #tpu.memory_space<vmem>>, vector<1x8x8xf32>
    %1 = vector.shape_cast %0 : vector<1x8x8xf32> to vector<8x8xf32>
    %c1 = arith.constant 1 : index
    %c0_2 = arith.constant 0 : index
    %c0_3 = arith.constant 0 : index
    %2 = vector.load %arg1[%c1, %c0_2, %c0_3] : memref<7x8x8xf32, #tpu.memory_space<vmem>>, vector<1x8x8xf32>
    %3 = vector.shape_cast %2 : vector<1x8x8xf32> to vector<8x8xf32>
    %c2 = arith.constant 2 : index
    %c0_4 = arith.constant 0 : index
    %c0_5 = arith.constant 0 : index
    %4 = vector.load %arg1[%c2, %c0_4, %c0_5] : memref<7x8x8xf32, #tpu.memory_space<vmem>>, vector<1x8x8xf32>
    %5 = vector.shape_cast %4 : vector<1x8x8xf32> to vector<8x8xf32>
    %c3 = arith.constant 3 : index
    %c0_6 = arith.constant 0 : index
    %c0_7 = arith.constant 0 : index
    %6 = vector.load %arg1[%c3, %c0_6, %c0_7] : memref<7x8x8xf32, #tpu.memory_space<vmem>>, vector<1x8x8xf32>
    %7 = vector.shape_cast %6 : vector<1x8x8xf32> to vector<8x8xf32>
    %c4 = arith.constant 4 : index
    %c0_8 = arith.constant 0 : index
    %c0_9 = arith.constant 0 : index
    %8 = vector.load %arg1[%c4, %c0_8, %c0_9] : memref<7x8x8xf32, #tpu.memory_space<vmem>>, vector<1x8x8xf32>
    %9 = vector.shape_cast %8 : vector<1x8x8xf32> to vector<8x8xf32>
    %c5 = arith.constant 5 : index
    %c0_10 = arith.constant 0 : index
    %c0_11 = arith.constant 0 : index
    %10 = vector.load %arg1[%c5, %c0_10, %c0_11] : memref<7x8x8xf32, #tpu.memory_space<vmem>>, vector<1x8x8xf32>
    %11 = vector.shape_cast %10 : vector<1x8x8xf32> to vector<8x8xf32>
    %c6 = arith.constant 6 : index
    %c0_12 = arith.constant 0 : index
    %c0_13 = arith.constant 0 : index
    %12 = vector.load %arg1[%c6, %c0_12, %c0_13] : memref<7x8x8xf32, #tpu.memory_space<vmem>>, vector<1x8x8xf32>
    %13 = vector.shape_cast %12 : vector<1x8x8xf32> to vector<8x8xf32>
    %c0_14 = arith.constant 0 : index
    %c0_15 = arith.constant 0 : index
    %c0_16 = arith.constant 0 : index
    %14 = vector.load %arg2[%c0_14, %c0_15, %c0_16] : memref<2x8x8xf32, #tpu.memory_space<vmem>>, vector<1x8x8xf32>
    %15 = vector.shape_cast %14 : vector<1x8x8xf32> to vector<8x8xf32>
    %16 = arith.mulf %3, %15 : vector<8x8xf32>
    %17 = arith.addf %1, %16 : vector<8x8xf32>
    %c0_17 = arith.constant 0 : index
    %c0_18 = arith.constant 0 : index
    %c0_19 = arith.constant 0 : index
    %18 = vector.load %arg3[%c0_17, %c0_18, %c0_19] : memref<2x8x8xf32, #tpu.memory_space<vmem>>, vector<1x8x8xf32>
    %19 = vector.shape_cast %18 : vector<1x8x8xf32> to vector<8x8xf32>
    %20 = arith.mulf %7, %19 : vector<8x8xf32>
    %21 = arith.addf %5, %20 : vector<8x8xf32>
    %c0_20 = arith.constant 0 : index
    %c0_21 = arith.constant 0 : index
    %c0_22 = arith.constant 0 : index
    %22 = vector.load %arg4[%c0_20, %c0_21, %c0_22] : memref<2x8x8xf32, #tpu.memory_space<vmem>>, vector<1x8x8xf32>
    %23 = vector.shape_cast %22 : vector<1x8x8xf32> to vector<8x8xf32>
    %24 = arith.mulf %11, %23 : vector<8x8xf32>
    %25 = arith.addf %9, %24 : vector<8x8xf32>
    %cst = arith.constant 1.000000e+00 : f32
    %26 = vector.broadcast %cst : f32 to vector<8x8xf32>
    %27 = arith.subf %26, %13 : vector<8x8xf32>
    %28 = arith.mulf %21, %27 : vector<8x8xf32>
    %29 = math.absf %21 : vector<8x8xf32>
    %30 = arith.mulf %29, %13 : vector<8x8xf32>
    %31 = arith.addf %28, %30 : vector<8x8xf32>
    %32 = math.absf %25 : vector<8x8xf32>
    %cst_23 = arith.constant dense<0.000000e+00> : vector<8x8xf32>
    %33 = tpu.matmul %17, %31, %cst_23 {dimension_numbers = #tpu.dot_dimension_numbers<[1], [0], [0], [1], [0, 0, 1, 1], [], []>} : vector<8x8xf32>, vector<8x8xf32>, vector<8x8xf32> -> vector<8x8xf32>
    %cst_24 = arith.constant dense<0.000000e+00> : vector<8x8xf32>
    %34 = tpu.matmul %33, %17, %cst_24 {dimension_numbers = #tpu.dot_dimension_numbers<[1], [1], [0], [0], [0, 0, 1, 0], [], []>} : vector<8x8xf32>, vector<8x8xf32>, vector<8x8xf32> -> vector<8x8xf32>
    %35 = arith.addf %34, %32 : vector<8x8xf32>
    %36 = tpu.transpose %35, [1, 0] : vector<8x8xf32> -> vector<8x8xf32>
    %37 = arith.addf %35, %36 : vector<8x8xf32>
    %cst_25 = arith.constant 5.000000e-01 : f32
    %38 = vector.broadcast %cst_25 : f32 to vector<8x8xf32>
    %39 = arith.mulf %37, %38 : vector<8x8xf32>
    %c0_26 = arith.constant 0 : index
    %c0_27 = arith.constant 0 : index
    %c0_28 = arith.constant 0 : index
    %40 = vector.load %arg5[%c0_26, %c0_27, %c0_28] : memref<2x8x8xf32, #tpu.memory_space<vmem>>, vector<1x8x8xf32>
    %41 = vector.shape_cast %40 : vector<1x8x8xf32> to vector<8x8xf32>
    %42 = vector.shape_cast %39 : vector<8x8xf32> to vector<1x8x8xf32>
    tpu.vector_store %arg5[%c0_26, %c0_27, %c0_28], %42 {strides = array<i32>} : memref<2x8x8xf32, #tpu.memory_space<vmem>>, vector<1x8x8xf32>,
    %c1_29 = arith.constant 1 : index
    %c0_30 = arith.constant 0 : index
    %c0_31 = arith.constant 0 : index
    %43 = vector.load %arg2[%c1_29, %c0_30, %c0_31] : memref<2x8x8xf32, #tpu.memory_space<vmem>>, vector<1x8x8xf32>
    %44 = vector.shape_cast %43 : vector<1x8x8xf32> to vector<8x8xf32>
    %45 = arith.mulf %3, %44 : vector<8x8xf32>
    %46 = arith.addf %1, %45 : vector<8x8xf32>
    %c1_32 = arith.constant 1 : index
    %c0_33 = arith.constant 0 : index
    %c0_34 = arith.constant 0 : index
    %47 = vector.load %arg3[%c1_32, %c0_33, %c0_34] : memref<2x8x8xf32, #tpu.memory_space<vmem>>, vector<1x8x8xf32>
    %48 = vector.shape_cast %47 : vector<1x8x8xf32> to vector<8x8xf32>
    %49 = arith.mulf %7, %48 : vector<8x8xf32>
    %50 = arith.addf %5, %49 : vector<8x8xf32>
    %c1_35 = arith.constant 1 : index
    %c0_36 = arith.constant 0 : index
    %c0_37 = arith.constant 0 : index
    %51 = vector.load %arg4[%c1_35, %c0_36, %c0_37] : memref<2x8x8xf32, #tpu.memory_space<vmem>>, vector<1x8x8xf32>
    %52 = vector.shape_cast %51 : vector<1x8x8xf32> to vector<8x8xf32>
    %53 = arith.mulf %11, %52 : vector<8x8xf32>
    %54 = arith.addf %9, %53 : vector<8x8xf32>
    %cst_38 = arith.constant 1.000000e+00 : f32
    %55 = vector.broadcast %cst_38 : f32 to vector<8x8xf32>
    %56 = arith.subf %55, %13 : vector<8x8xf32>
    %57 = arith.mulf %50, %56 : vector<8x8xf32>
    %58 = math.absf %50 : vector<8x8xf32>
    %59 = arith.mulf %58, %13 : vector<8x8xf32>
    %60 = arith.addf %57, %59 : vector<8x8xf32>
    %61 = math.absf %54 : vector<8x8xf32>
    %cst_39 = arith.constant dense<0.000000e+00> : vector<8x8xf32>
    %62 = tpu.matmul %46, %60, %cst_39 {dimension_numbers = #tpu.dot_dimension_numbers<[1], [0], [0], [1], [0, 0, 1, 1], [], []>} : vector<8x8xf32>, vector<8x8xf32>, vector<8x8xf32> -> vector<8x8xf32>
    %cst_40 = arith.constant dense<0.000000e+00> : vector<8x8xf32>
    %63 = tpu.matmul %62, %46, %cst_40 {dimension_numbers = #tpu.dot_dimension_numbers<[1], [1], [0], [0], [0, 0, 1, 0], [], []>} : vector<8x8xf32>, vector<8x8xf32>, vector<8x8xf32> -> vector<8x8xf32>
    %64 = arith.addf %63, %61 : vector<8x8xf32>
    %65 = tpu.transpose %64, [1, 0] : vector<8x8xf32> -> vector<8x8xf32>
    %66 = arith.addf %64, %65 : vector<8x8xf32>
    %cst_41 = arith.constant 5.000000e-01 : f32
    %67 = vector.broadcast %cst_41 : f32 to vector<8x8xf32>
    %68 = arith.mulf %66, %67 : vector<8x8xf32>
    %c1_42 = arith.constant 1 : index
    %c0_43 = arith.constant 0 : index
    %c0_44 = arith.constant 0 : index
    %69 = vector.load %arg5[%c1_42, %c0_43, %c0_44] : memref<2x8x8xf32, #tpu.memory_space<vmem>>, vector<1x8x8xf32>
    %70 = vector.shape_cast %69 : vector<1x8x8xf32> to vector<8x8xf32>
    %71 = vector.shape_cast %68 : vector<8x8xf32> to vector<1x8x8xf32>
    tpu.vector_store %arg5[%c1_42, %c0_43, %c0_44], %71 {strides = array<i32>} : memref<2x8x8xf32, #tpu.memory_space<vmem>>, vector<1x8x8xf32>,
    return
  }
  func.func @transform_0(%arg0: i32) -> (i32, i32, i32) {
    %c0_i32 = arith.constant 0 : i32
    %c0_i32_0 = arith.constant 0 : i32
    %c0_i32_1 = arith.constant 0 : i32
    %c0_i32_2 = arith.constant 0 : i32
    return %c0_i32, %c0_i32_0, %c0_i32_1 : i32, i32, i32
  }
  func.func @transform_1(%arg0: i32) -> (i32, i32, i32) {
    %c0_i32 = arith.constant 0 : i32
    %c0_i32_0 = arith.constant 0 : i32
    %c0_i32_1 = arith.constant 0 : i32
    return %arg0, %c0_i32, %c0_i32_0 : i32, i32, i32
  }
  func.func @transform_2(%arg0: i32) -> (i32, i32, i32) {
    %c0_i32 = arith.constant 0 : i32
    %c0_i32_0 = arith.constant 0 : i32
    %c0_i32_1 = arith.constant 0 : i32
    return %arg0, %c0_i32, %c0_i32_0 : i32, i32, i32
  }
  func.func @transform_3(%arg0: i32) -> (i32, i32, i32) {
    %c0_i32 = arith.constant 0 : i32
    %c0_i32_0 = arith.constant 0 : i32
    %c0_i32_1 = arith.constant 0 : i32
    return %arg0, %c0_i32, %c0_i32_0 : i32, i32, i32
  }
  func.func @transform_4(%arg0: i32) -> (i32, i32, i32) {
    %c0_i32 = arith.constant 0 : i32
    %c0_i32_0 = arith.constant 0 : i32
    %c0_i32_1 = arith.constant 0 : i32
    return %arg0, %c0_i32, %c0_i32_0 : i32, i32, i32
  }
}

</mosaic_0001>

<llo_original>
// kernel: custom-call.6
$region0: #{custom-call.6}
  %s0 = inlined_call_operand.vmem [shape: f32[2,6,6], index: 0, kind: input, shape index: {}]
  %s1 = inlined_call_operand.vmem [shape: f32[2,6,6], index: 1, kind: output, shape index: {}]
  $region1: #{custom-call.6} parent=0
    #allocation0 [shape = 'u8[8192]{0}', space=vmem, size = 0x2000, scoped, tag = 'operand span for operand 0']
    #allocation1 [shape = 'u8[8192]{0}', space=vmem, size = 0x2000, scoped, tag = 'operand span for operand 1']
    loop: start=0, step=1, limit=4
    $region2: #{custom-call.6} parent=1 // loop_pre_header
      _
    $region3: #{custom-call.6} parent=1 // loop_header
      %s3 = sphi 0, %s7
      %p4 = scmp.ge.s32.totalorder %s3, 4
      %s10 = sphi 0, %s29
      %s11 = sphi 0, %s25
      %s12 = sphi 0, %s21
      %s13 = sphi 0, %s10
      %s14 = sphi 0, %s11
      %s15 = sphi 0, %s12
      %s16 = sphi 0, %s13
      %s17 = sphi 0, %s14
      %s18 = sphi 0, %s15
    $region4: #{custom-call.6} parent=1 // loop_header_branch
      %6 = sbr.rel (%p4) target = $region8
    $region5: #{custom-call.6} parent=1 // loop_body
      %s8 = ssub.s32 %s3, 1
      %s9 = ssub.s32 %s3, 2
      %s19 = sadd.s32 1, %s12
      %p20 = scmp.ge.s32.totalorder %s19, 1
      %s21 = scalar_select %p20, 0, %s19
      %s22 = sadd.s32 1, %s11
      %s23 = scalar_select %p20, %s22, %s11
      %p24 = scmp.ge.s32.totalorder %s23, 1
      %s25 = scalar_select %p24, 0, %s23
      %s26 = sadd.s32 1, %s10
      %s27 = scalar_select %p24, %s26, %s10
      %p28 = scmp.ge.s32.totalorder %s27, 2
      %s29 = scalar_select %p28, 0, %s27
      %p30 = scmp.le.s32.totalorder 1, %s3
      %p31 = scmp.lt.s32.totalorder %s3, 3
      %p32 = pnand %p30, %p31
      %p33 = pneg %p32
      // Predicated region
      $region9: #{custom-call.6} parent=5 // pred_check
        _
      $region10: #{custom-call.6} parent=5 // pred_check_branch
        %35 = sbr.rel (%p32) target = $region12
      $region11: #{custom-call.6} parent=5 // pred_region
        %s36 = ssub.s32 %s3, 1
      $region12: #{custom-call.6} parent=5 // pred_fallthru
        _
      %p37 = scmp.lt.s32.totalorder %s3, 2
      // Predicated region
      $region13: #{custom-call.6} parent=5 // pred_check
        %p38 = pneg %p37
      $region14: #{custom-call.6} parent=5 // pred_check_branch
        %40 = sbr.rel (%p38) target = $region16
      $region15: #{custom-call.6} parent=5 // pred_region
        %s41 = sand.u32 %s3, 1
        %s42 = sand.u32 %s3, 1
        %s43 = smul.addr %s42, 8
        %s44 = scalar_lea.vmem [#allocation0], %s43
        %s45 = sadd.s32 %s12, %s11
        %s46 = sadd.s32 %s45, %s10
        %s47 = smul.addr %s46, 8
        %s48 = scalar_lea.vmem %s0, %s47
        // Predicated region
        $region17: #{custom-call.6} parent=15 // pred_check
          _
        $region18: #{custom-call.6} parent=15 // pred_check_branch
          %50 = sbr.rel (0) target = $region20
        $region19: #{custom-call.6} parent=15 // pred_region
          // Predicated region
          $region21: #{custom-call.6} parent=19 // pred_check
            _
          $region22: #{custom-call.6} parent=19 // pred_check_branch
            %52 = sbr.rel (0) target = $region24
          $region23: #{custom-call.6} parent=19 // pred_region
            // Predicated region
            $region36: #{custom-call.6} parent=23 // pred_check
              _
            $region37: #{custom-call.6} parent=23 // pred_check_branch
              %67 = sbr.rel (0) target = $region39
            $region38: #{custom-call.6} parent=23 // pred_region
              loop: start=0, step=1, limit=1
              $region40: #{custom-call.6} parent=38 // loop_pre_header
                _
              $region41: #{custom-call.6} parent=38 // loop_header
                %s69 = sphi 0, %s73
                %p70 = scmp.ge.s32.totalorder %s69, 1
                %s74 = sphi %s48, %s48
                %s75 = sphi %s44, %s44
              $region42: #{custom-call.6} parent=38 // loop_header_branch
                %72 = sbr.rel (%p70) target = $region46
              $region43: #{custom-call.6} parent=38 // loop_body
                %v76 = vld [vmem:[%s74] sm:$0xff]
                %77 = vst [vmem:[%s75] sm:$0xff] %v76
              $region44: #{custom-call.6} parent=38 // loop_footer
                %s73 = sadd.s32 1, %s69
              $region45: #{custom-call.6} parent=38 // loop_footer_branch
                %68 = sbr.rel target = $region41
              $region46: #{custom-call.6} parent=38 // loop_exit
                _
            $region39: #{custom-call.6} parent=23 // pred_fallthru
              _
            // Predicated region
            $region47: #{custom-call.6} parent=23 // pred_check
              _
            $region48: #{custom-call.6} parent=23 // pred_check_branch
              %79 = sbr.rel target = $region50
            $region49: #{custom-call.6} parent=23 // pred_region
              _
            $region50: #{custom-call.6} parent=23 // pred_fallthru
              _
          $region24: #{custom-call.6} parent=19 // pred_fallthru
            _
          // Predicated region
          $region25: #{custom-call.6} parent=19 // pred_check
            _
          $region26: #{custom-call.6} parent=19 // pred_check_branch
            %54 = sbr.rel target = $region28
          $region27: #{custom-call.6} parent=19 // pred_region
            loop: start=0, step=1, limit=1
            $region29: #{custom-call.6} parent=27 // loop_pre_header
              _
            $region30: #{custom-call.6} parent=27 // loop_header
              %s57 = sphi 0, %s61
              %p58 = scmp.ge.s32.totalorder %s57, 1
              %s62 = sphi %s48, %s48
              %s63 = sphi %s44, %s44
            $region31: #{custom-call.6} parent=27 // loop_header_branch
              %60 = sbr.rel (%p58) target = $region35
            $region32: #{custom-call.6} parent=27 // loop_body
              %v64 = vld [vmem:[%s62] sm:$0xff]
              %65 = vst [vmem:[%s63] sm:$0xff] %v64
            $region33: #{custom-call.6} parent=27 // loop_footer
              %s61 = sadd.s32 1, %s57
            $region34: #{custom-call.6} parent=27 // loop_footer_branch
              %56 = sbr.rel target = $region30
            $region35: #{custom-call.6} parent=27 // loop_exit
              _
          $region28: #{custom-call.6} parent=19 // pred_fallthru
            _
        $region20: #{custom-call.6} parent=15 // pred_fallthru
          _
        %80 = vnop
      $region16: #{custom-call.6} parent=5 // pred_fallthru
        _
      %p81 = scmp.le.s32.totalorder 1, %s3
      %p82 = scmp.lt.s32.totalorder %s3, 3
      %p83 = pnand %p81, %p82
      %p84 = pneg %p83
      // Predicated region
      $region51: #{custom-call.6} parent=5 // pred_check
        _
      $region52: #{custom-call.6} parent=5 // pred_check_branch
        %86 = sbr.rel (%p83) target = $region54
      $region53: #{custom-call.6} parent=5 // pred_region
        %s87 = ssub.s32 %s3, 1
        %s88 = sand.u32 %s8, 1
        %s89 = sand.u32 %s8, 1
        %s90 = smul.addr %s89, 8
        %s91 = scalar_lea.vmem [#allocation0], %s90
        %s92 = sand.u32 %s8, 1
        %s93 = sand.u32 %s8, 1
        %s94 = smul.addr %s93, 8
        %s95 = scalar_lea.vmem [#allocation0], %s94
        %s96 = sand.u32 %s8, 1
        %s97 = sand.u32 %s8, 1
        %s98 = smul.addr %s97, 8
        %s99 = scalar_lea.vmem [#allocation1], %s98
        %100 = vst [vmem:[%s99] sm:$0xff] 0.0
        %vm101 = vcmask 7168
        %v102 = vld [vmem:[%s99] ss:$0 sm:$0xff]
        %v103 = vld [vmem:[%s91] ss:$0 sm:$0xff]
        %v104 = vmul.f32 %v102, %v102
        %105 = vadd.xlane.f32.xlu0 %v104
        %v106 = vpop.xlane.xlu0 %105
        %v107 = vsub.f32 %v103, %v106
        %v108 = vrsqrt.pop %v107
        %v109 = vld [vmem:[%s91] sm:$0xff]
        %v110 = vld [vmem:[%s99] sm:$0xff]
        %v111 = vmul.f32 %v110, %v102
        %112 = vadd.xlane.f32.xlu0 %v111
        %v113 = vpop.xlane.xlu0 %112
        %v114 = vsub.f32 %v109, %v113
        %v115 = vmul.f32 %v114, %v108
        %v116 = vsel %vm101, %v115, 0.0
        %v117 = vadd.f32 %v110, %v116
        %118 = vst [vmem:[%s99] sm:$0xff] %v117
        %vm119 = vcmask 15368
        %s120 = scalar_lea.vmem %s99, 1 [#allocation1]
        %v121 = vld [vmem:[%s120] ss:$0 sm:$0xff]
        %s122 = scalar_lea.vmem %s91, 1 [#allocation0]
        %v123 = vld [vmem:[%s122] ss:$0 sm:$0xff]
        %v124 = vmul.f32 %v121, %v121
        %125 = vadd.xlane.f32.xlu0 %v124
        %v126 = vpop.xlane.xlu0 %125
        %v127 = vsub.f32 %v123, %v126
        %v128 = vrsqrt.pop %v127
        %v129 = vld [vmem:[%s91] sm:$0xff]
        %v130 = vld [vmem:[%s99] sm:$0xff]
        %v131 = vmul.f32 %v130, %v121
        %132 = vadd.xlane.f32.xlu0 %v131
        %v133 = vpop.xlane.xlu0 %132
        %v134 = vsub.f32 %v129, %v133
        %v135 = vmul.f32 %v134, %v128
        %vm136 = vcmask 1047553
        %vm137 = vmand %vm119, %vm136
        %v138 = vsel %vm137, %v135, 0.0
        %v139 = vadd.f32 %v130, %v138
        %140 = vst [vmem:[%s99] sm:$0xff] %v139
        %vm141 = vcmask 23568
        %s142 = scalar_lea.vmem %s99, 2 [#allocation1]
        %v143 = vld [vmem:[%s142] ss:$0 sm:$0xff]
        %s144 = scalar_lea.vmem %s91, 2 [#allocation0]
        %v145 = vld [vmem:[%s144] ss:$0 sm:$0xff]
        %v146 = vmul.f32 %v143, %v143
        %147 = vadd.xlane.f32.xlu0 %v146
        %v148 = vpop.xlane.xlu0 %147
        %v149 = vsub.f32 %v145, %v148
        %v150 = vrsqrt.pop %v149
        %v151 = vld [vmem:[%s91] sm:$0xff]
        %v152 = vld [vmem:[%s99] sm:$0xff]
        %v153 = vmul.f32 %v152, %v143
        %154 = vadd.xlane.f32.xlu0 %v153
        %v155 = vpop.xlane.xlu0 %154
        %v156 = vsub.f32 %v151, %v155
        %v157 = vmul.f32 %v156, %v150
        %vm158 = vcmask 1047554
        %vm159 = vmand %vm141, %vm158
        %v160 = vsel %vm159, %v157, 0.0
        %v161 = vadd.f32 %v152, %v160
        %162 = vst [vmem:[%s99] sm:$0xff] %v161
        %vm163 = vcmask 31768
        %s164 = scalar_lea.vmem %s99, 3 [#allocation1]
        %v165 = vld [vmem:[%s164] ss:$0 sm:$0xff]
        %s166 = scalar_lea.vmem %s91, 3 [#allocation0]
        %v167 = vld [vmem:[%s166] ss:$0 sm:$0xff]
        %v168 = vmul.f32 %v165, %v165
        %169 = vadd.xlane.f32.xlu0 %v168
        %v170 = vpop.xlane.xlu0 %169
        %v171 = vsub.f32 %v167, %v170
        %v172 = vrsqrt.pop %v171
        %v173 = vld [vmem:[%s91] sm:$0xff]
        %v174 = vld [vmem:[%s99] sm:$0xff]
        %v175 = vmul.f32 %v174, %v165
        %176 = vadd.xlane.f32.xlu0 %v175
        %v177 = vpop.xlane.xlu0 %176
        %v178 = vsub.f32 %v173, %v177
        %v179 = vmul.f32 %v178, %v172
        %vm180 = vcmask 1047555
        %vm181 = vmand %vm163, %vm180
        %v182 = vsel %vm181, %v179, 0.0
        %v183 = vadd.f32 %v174, %v182
        %184 = vst [vmem:[%s99] sm:$0xff] %v183
        %vm185 = vcmask 39968
        %s186 = scalar_lea.vmem %s99, 4 [#allocation1]
        %v187 = vld [vmem:[%s186] ss:$0 sm:$0xff]
        %s188 = scalar_lea.vmem %s91, 4 [#allocation0]
        %v189 = vld [vmem:[%s188] ss:$0 sm:$0xff]
        %v190 = vmul.f32 %v187, %v187
        %191 = vadd.xlane.f32.xlu0 %v190
        %v192 = vpop.xlane.xlu0 %191
        %v193 = vsub.f32 %v189, %v192
        %v194 = vrsqrt.pop %v193
        %v195 = vld [vmem:[%s91] sm:$0xff]
        %v196 = vld [vmem:[%s99] sm:$0xff]
        %v197 = vmul.f32 %v196, %v187
        %198 = vadd.xlane.f32.xlu0 %v197
        %v199 = vpop.xlane.xlu0 %198
        %v200 = vsub.f32 %v195, %v199
        %v201 = vmul.f32 %v200, %v194
        %vm202 = vcmask 1047556
        %vm203 = vmand %vm185, %vm202
        %v204 = vsel %vm203, %v201, 0.0
        %v205 = vadd.f32 %v196, %v204
        %206 = vst [vmem:[%s99] sm:$0xff] %v205
        %vm207 = vcmask 48168
        %s208 = scalar_lea.vmem %s99, 5 [#allocation1]
        %v209 = vld [vmem:[%s208] ss:$0 sm:$0xff]
        %s210 = scalar_lea.vmem %s91, 5 [#allocation0]
        %v211 = vld [vmem:[%s210] ss:$0 sm:$0xff]
        %v212 = vmul.f32 %v209, %v209
        %213 = vadd.xlane.f32.xlu0 %v212
        %v214 = vpop.xlane.xlu0 %213
        %v215 = vsub.f32 %v211, %v214
        %v216 = vrsqrt.pop %v215
        %v217 = vld [vmem:[%s91] sm:$0xff]
        %v218 = vld [vmem:[%s99] sm:$0xff]
        %v219 = vmul.f32 %v218, %v209
        %220 = vadd.xlane.f32.xlu0 %v219
        %v221 = vpop.xlane.xlu0 %220
        %v222 = vsub.f32 %v217, %v221
        %v223 = vmul.f32 %v222, %v216
        %vm224 = vcmask 1047557
        %vm225 = vmand %vm207, %vm224
        %v226 = vsel %vm225, %v223, 0.0
        %v227 = vadd.f32 %v218, %v226
        %228 = vst [vmem:[%s99] sm:$0xff] %v227
        %s229 = sand.u32 %s8, 1
        %s230 = sand.u32 %s8, 1
        %s231 = smul.addr %s230, 8
        %s232 = scalar_lea.vmem [#allocation1], %s231
        %s233 = sadd.s32 %s15, %s14
        %s234 = sadd.s32 %s233, %s13
        %s235 = smul.addr %s234, 8
        %s236 = scalar_lea.vmem %s1, %s235
        // Predicated region
        $region55: #{custom-call.6} parent=53 // pred_check
          _
        $region56: #{custom-call.6} parent=53 // pred_check_branch
          %238 = sbr.rel (0) target = $region58
        $region57: #{custom-call.6} parent=53 // pred_region
          // Predicated region
          $region59: #{custom-call.6} parent=57 // pred_check
            _
          $region60: #{custom-call.6} parent=57 // pred_check_branch
            %240 = sbr.rel (0) target = $region62
          $region61: #{custom-call.6} parent=57 // pred_region
            // Predicated region
            $region74: #{custom-call.6} parent=61 // pred_check
              _
            $region75: #{custom-call.6} parent=61 // pred_check_branch
              %255 = sbr.rel (0) target = $region77
            $region76: #{custom-call.6} parent=61 // pred_region
              loop: start=0, step=1, limit=1
              $region78: #{custom-call.6} parent=76 // loop_pre_header
                _
              $region79: #{custom-call.6} parent=76 // loop_header
                %s257 = sphi 0, %s261
                %p258 = scmp.ge.s32.totalorder %s257, 1
                %s262 = sphi %s232, %s232
                %s263 = sphi %s236, %s236
              $region80: #{custom-call.6} parent=76 // loop_header_branch
                %260 = sbr.rel (%p258) target = $region84
              $region81: #{custom-call.6} parent=76 // loop_body
                %v264 = vld [vmem:[%s262] sm:$0xff]
                %265 = vst [vmem:[%s263] sm:$0xff] %v264
              $region82: #{custom-call.6} parent=76 // loop_footer
                %s261 = sadd.s32 1, %s257
              $region83: #{custom-call.6} parent=76 // loop_footer_branch
                %256 = sbr.rel target = $region79
              $region84: #{custom-call.6} parent=76 // loop_exit
                _
            $region77: #{custom-call.6} parent=61 // pred_fallthru
              _
            // Predicated region
            $region85: #{custom-call.6} parent=61 // pred_check
              _
            $region86: #{custom-call.6} parent=61 // pred_check_branch
              %267 = sbr.rel target = $region88
            $region87: #{custom-call.6} parent=61 // pred_region
              _
            $region88: #{custom-call.6} parent=61 // pred_fallthru
              _
          $region62: #{custom-call.6} parent=57 // pred_fallthru
            _
          // Predicated region
          $region63: #{custom-call.6} parent=57 // pred_check
            _
          $region64: #{custom-call.6} parent=57 // pred_check_branch
            %242 = sbr.rel target = $region66
          $region65: #{custom-call.6} parent=57 // pred_region
            loop: start=0, step=1, limit=1
            $region67: #{custom-call.6} parent=65 // loop_pre_header
              _
            $region68: #{custom-call.6} parent=65 // loop_header
              %s245 = sphi 0, %s249
              %p246 = scmp.ge.s32.totalorder %s245, 1
              %s250 = sphi %s232, %s232
              %s251 = sphi %s236, %s236
            $region69: #{custom-call.6} parent=65 // loop_header_branch
              %248 = sbr.rel (%p246) target = $region73
            $region70: #{custom-call.6} parent=65 // loop_body
              %v252 = vld [vmem:[%s250] sm:$0xff]
              %253 = vst [vmem:[%s251] sm:$0xff] %v252
            $region71: #{custom-call.6} parent=65 // loop_footer
              %s249 = sadd.s32 1, %s245
            $region72: #{custom-call.6} parent=65 // loop_footer_branch
              %244 = sbr.rel target = $region68
            $region73: #{custom-call.6} parent=65 // loop_exit
              _
          $region66: #{custom-call.6} parent=57 // pred_fallthru
            _
        $region58: #{custom-call.6} parent=53 // pred_fallthru
          _
        %268 = vnop
      $region54: #{custom-call.6} parent=5 // pred_fallthru
        _
      %p269 = scmp.le.s32.totalorder 2, %s3
      // Predicated region
      $region89: #{custom-call.6} parent=5 // pred_check
        %p270 = pneg %p269
      $region90: #{custom-call.6} parent=5 // pred_check_branch
        %272 = sbr.rel (%p270) target = $region92
      $region91: #{custom-call.6} parent=5 // pred_region
        %s273 = ssub.s32 %s3, 2
        %s274 = sand.u32 %s9, 1
        %s275 = sand.u32 %s9, 1
        %s276 = smul.addr %s275, 8
        %s277 = scalar_lea.vmem [#allocation1], %s276
      $region92: #{custom-call.6} parent=5 // pred_fallthru
        _
    $region6: #{custom-call.6} parent=1 // loop_footer
      %s7 = sadd.s32 1, %s3
    $region7: #{custom-call.6} parent=1 // loop_footer_branch
      %2 = sbr.rel target = $region3
    $region8: #{custom-call.6} parent=1 // loop_exit
      _

// kernel: custom-call.7
$region0: #{custom-call.7}
  %s0 = inlined_call_operand.vmem [shape: f32[2,1,6,6], index: 0, kind: input, shape index: {}]
  %s1 = inlined_call_operand.vmem [shape: f32[2,1,6,6], index: 1, kind: output, shape index: {}]
  $region1: #{custom-call.7} parent=0
    #allocation0 [shape = 'u8[8192]{0}', space=vmem, size = 0x2000, scoped, tag = 'operand span for operand 0']
    #allocation1 [shape = 'u8[8192]{0}', space=vmem, size = 0x2000, scoped, tag = 'operand span for operand 1']
    loop: start=0, step=1, limit=4
    $region2: #{custom-call.7} parent=1 // loop_pre_header
      _
    $region3: #{custom-call.7} parent=1 // loop_header
      %s3 = sphi 0, %s7
      %p4 = scmp.ge.s32.totalorder %s3, 4
      %s10 = sphi 0, %s36
      %s11 = sphi 0, %s32
      %s12 = sphi 0, %s28
      %s13 = sphi 0, %s24
      %s14 = sphi 0, %s10
      %s15 = sphi 0, %s11
      %s16 = sphi 0, %s12
      %s17 = sphi 0, %s13
      %s18 = sphi 0, %s14
      %s19 = sphi 0, %s15
      %s20 = sphi 0, %s16
      %s21 = sphi 0, %s17
    $region4: #{custom-call.7} parent=1 // loop_header_branch
      %6 = sbr.rel (%p4) target = $region8
    $region5: #{custom-call.7} parent=1 // loop_body
      %s8 = ssub.s32 %s3, 1
      %s9 = ssub.s32 %s3, 2
      %s22 = sadd.s32 1, %s13
      %p23 = scmp.ge.s32.totalorder %s22, 1
      %s24 = scalar_select %p23, 0, %s22
      %s25 = sadd.s32 1, %s12
      %s26 = scalar_select %p23, %s25, %s12
      %p27 = scmp.ge.s32.totalorder %s26, 1
      %s28 = scalar_select %p27, 0, %s26
      %s29 = sadd.s32 1, %s11
      %s30 = scalar_select %p27, %s29, %s11
      %p31 = scmp.ge.s32.totalorder %s30, 1
      %s32 = scalar_select %p31, 0, %s30
      %s33 = sadd.s32 1, %s10
      %s34 = scalar_select %p31, %s33, %s10
      %p35 = scmp.ge.s32.totalorder %s34, 2
      %s36 = scalar_select %p35, 0, %s34
      %p37 = scmp.le.s32.totalorder 1, %s3
      %p38 = scmp.lt.s32.totalorder %s3, 3
      %p39 = pnand %p37, %p38
      %p40 = pneg %p39
      // Predicated region
      $region9: #{custom-call.7} parent=5 // pred_check
        _
      $region10: #{custom-call.7} parent=5 // pred_check_branch
        %42 = sbr.rel (%p39) target = $region12
      $region11: #{custom-call.7} parent=5 // pred_region
        %s43 = ssub.s32 %s3, 1
      $region12: #{custom-call.7} parent=5 // pred_fallthru
        _
      %p44 = scmp.lt.s32.totalorder %s3, 2
      // Predicated region
      $region13: #{custom-call.7} parent=5 // pred_check
        %p45 = pneg %p44
      $region14: #{custom-call.7} parent=5 // pred_check_branch
        %47 = sbr.rel (%p45) target = $region16
      $region15: #{custom-call.7} parent=5 // pred_region
        %s48 = sand.u32 %s3, 1
        %s49 = sand.u32 %s3, 1
        %s50 = smul.addr %s49, 8
        %s51 = scalar_lea.vmem [#allocation0], %s50
        %s52 = sadd.s32 %s13, %s12
        %s53 = sadd.s32 %s52, %s11
        %s54 = sadd.s32 %s53, %s10
        %s55 = smul.addr %s54, 8
        %s56 = scalar_lea.vmem %s0, %s55
        // Predicated region
        $region17: #{custom-call.7} parent=15 // pred_check
          _
        $region18: #{custom-call.7} parent=15 // pred_check_branch
          %58 = sbr.rel (0) target = $region20
        $region19: #{custom-call.7} parent=15 // pred_region
          // Predicated region
          $region21: #{custom-call.7} parent=19 // pred_check
            _
          $region22: #{custom-call.7} parent=19 // pred_check_branch
            %60 = sbr.rel (0) target = $region24
          $region23: #{custom-call.7} parent=19 // pred_region
            // Predicated region
            $region36: #{custom-call.7} parent=23 // pred_check
              _
            $region37: #{custom-call.7} parent=23 // pred_check_branch
              %75 = sbr.rel (0) target = $region39
            $region38: #{custom-call.7} parent=23 // pred_region
              loop: start=0, step=1, limit=1
              $region40: #{custom-call.7} parent=38 // loop_pre_header
                _
              $region41: #{custom-call.7} parent=38 // loop_header
                %s77 = sphi 0, %s81
                %p78 = scmp.ge.s32.totalorder %s77, 1
                %s82 = sphi %s56, %s56
                %s83 = sphi %s51, %s51
              $region42: #{custom-call.7} parent=38 // loop_header_branch
                %80 = sbr.rel (%p78) target = $region46
              $region43: #{custom-call.7} parent=38 // loop_body
                %v84 = vld [vmem:[%s82] sm:$0xff]
                %85 = vst [vmem:[%s83] sm:$0xff] %v84
              $region44: #{custom-call.7} parent=38 // loop_footer
                %s81 = sadd.s32 1, %s77
              $region45: #{custom-call.7} parent=38 // loop_footer_branch
                %76 = sbr.rel target = $region41
              $region46: #{custom-call.7} parent=38 // loop_exit
                _
            $region39: #{custom-call.7} parent=23 // pred_fallthru
              _
            // Predicated region
            $region47: #{custom-call.7} parent=23 // pred_check
              _
            $region48: #{custom-call.7} parent=23 // pred_check_branch
              %87 = sbr.rel target = $region50
            $region49: #{custom-call.7} parent=23 // pred_region
              _
            $region50: #{custom-call.7} parent=23 // pred_fallthru
              _
          $region24: #{custom-call.7} parent=19 // pred_fallthru
            _
          // Predicated region
          $region25: #{custom-call.7} parent=19 // pred_check
            _
          $region26: #{custom-call.7} parent=19 // pred_check_branch
            %62 = sbr.rel target = $region28
          $region27: #{custom-call.7} parent=19 // pred_region
            loop: start=0, step=1, limit=1
            $region29: #{custom-call.7} parent=27 // loop_pre_header
              _
            $region30: #{custom-call.7} parent=27 // loop_header
              %s65 = sphi 0, %s69
              %p66 = scmp.ge.s32.totalorder %s65, 1
              %s70 = sphi %s56, %s56
              %s71 = sphi %s51, %s51
            $region31: #{custom-call.7} parent=27 // loop_header_branch
              %68 = sbr.rel (%p66) target = $region35
            $region32: #{custom-call.7} parent=27 // loop_body
              %v72 = vld [vmem:[%s70] sm:$0xff]
              %73 = vst [vmem:[%s71] sm:$0xff] %v72
            $region33: #{custom-call.7} parent=27 // loop_footer
              %s69 = sadd.s32 1, %s65
            $region34: #{custom-call.7} parent=27 // loop_footer_branch
              %64 = sbr.rel target = $region30
            $region35: #{custom-call.7} parent=27 // loop_exit
              _
          $region28: #{custom-call.7} parent=19 // pred_fallthru
            _
        $region20: #{custom-call.7} parent=15 // pred_fallthru
          _
        %88 = vnop
      $region16: #{custom-call.7} parent=5 // pred_fallthru
        _
      %p89 = scmp.le.s32.totalorder 1, %s3
      %p90 = scmp.lt.s32.totalorder %s3, 3
      %p91 = pnand %p89, %p90
      %p92 = pneg %p91
      // Predicated region
      $region51: #{custom-call.7} parent=5 // pred_check
        _
      $region52: #{custom-call.7} parent=5 // pred_check_branch
        %94 = sbr.rel (%p91) target = $region54
      $region53: #{custom-call.7} parent=5 // pred_region
        #allocation2 [shape = 'f32[6,6]{1,0}', space=vmem, size = 0x1000, scoped, tag = 'rescaled input a']
        %s95 = ssub.s32 %s3, 1
        %s96 = sand.u32 %s8, 1
        %s97 = sand.u32 %s8, 1
        %s98 = smul.addr %s97, 8
        %s99 = scalar_lea.vmem [#allocation0], %s98
        %s100 = sand.u32 %s8, 1
        %s101 = sand.u32 %s8, 1
        %s102 = smul.addr %s101, 8
        %s103 = scalar_lea.vmem [#allocation0], %s102
        %s104 = sand.u32 %s8, 1
        %s105 = sand.u32 %s8, 1
        %s106 = smul.addr %s105, 8
        %s107 = scalar_lea.vmem [#allocation1], %s106
        %v108 = vlaneseq
        %v109 = vand.u32 %v108, 127
        %vm110 = vcmp.lt.s32.totalorder %v109, 6
        %v111 = vlaneseq
        %v112 = vshrl.u32 %v111, 7
        %vm114 = vcmp.eq.s32.totalorder %v112, %v109
        %v115 = vld [vmem:[%s99] sm:$0xff]
        %v116 = vsel %vm114, %v115, 0.0
        %117 = vadd.xlane.f32.xlu0 %v116
        %v118 = vpop.xlane.xlu0 %117
        %vm119 = vcmp.ge.s32.totalorder %v112, %v109
        %vm120 = vmand %vm119, %vm110
        %v121 = vsel %vm120, %v115, 0.0
        %v122 = vrcp.pop %v118
        %v123 = vmul.f32 %v121, %v122
        %124 = vst [vmem:[#allocation2] sm:$0xff] %v123
        %v125 = vlaneseq
        %v126 = vand.u32 %v125, 127
        %v127 = vlaneseq
        %v128 = vshrl.u32 %v127, 7
        %vm130 = vcmp.eq.s32.totalorder %v126, %v128
        %v131 = vlaneseq
        %v132 = vand.u32 %v131, 127
        %vm133 = vcmp.eq.s32.totalorder %v132, 0
        %v134 = vsel %vm133, 1.0, -1.0
        %v135 = vsel %vm130, %v134, 0.0
        %s136 = scalar_lea.vmem [#allocation2], 1
        %v137 = vld [vmem:[%s136] ss:$0 sm:$0xff]
        %v138 = vxor.u32 %v137, 2147483648
        %v139 = vlaneseq
        %v140 = vand.u32 %v139, 127
        %vm141 = vcmp.eq.s32.totalorder %v140, 1
        %v142 = vmul.f32 %v138, %v135
        %143 = vadd.xlane.f32.xlu0 %v142
        %v144 = vpop.xlane.xlu0 %143
        %v145 = vsel %vm141, %v144, %v135
        %s146 = scalar_lea.vmem [#allocation2], 2
        %v147 = vld [vmem:[%s146] ss:$0 sm:$0xff]
        %v148 = vxor.u32 %v147, 2147483648
        %v149 = vlaneseq
        %v150 = vand.u32 %v149, 127
        %vm151 = vcmp.eq.s32.totalorder %v150, 2
        %v152 = vmul.f32 %v148, %v145
        %153 = vadd.xlane.f32.xlu0 %v152
        %v154 = vpop.xlane.xlu0 %153
        %v155 = vsel %vm151, %v154, %v145
        %s156 = scalar_lea.vmem [#allocation2], 3
        %v157 = vld [vmem:[%s156] ss:$0 sm:$0xff]
        %v158 = vxor.u32 %v157, 2147483648
        %v159 = vlaneseq
        %v160 = vand.u32 %v159, 127
        %vm161 = vcmp.eq.s32.totalorder %v160, 3
        %v162 = vmul.f32 %v158, %v155
        %163 = vadd.xlane.f32.xlu0 %v162
        %v164 = vpop.xlane.xlu0 %163
        %v165 = vsel %vm161, %v164, %v155
        %s166 = scalar_lea.vmem [#allocation2], 4
        %v167 = vld [vmem:[%s166] ss:$0 sm:$0xff]
        %v168 = vxor.u32 %v167, 2147483648
        %v169 = vlaneseq
        %v170 = vand.u32 %v169, 127
        %vm171 = vcmp.eq.s32.totalorder %v170, 4
        %v172 = vmul.f32 %v168, %v165
        %173 = vadd.xlane.f32.xlu0 %v172
        %v174 = vpop.xlane.xlu0 %173
        %v175 = vsel %vm171, %v174, %v165
        %s176 = scalar_lea.vmem [#allocation2], 5
        %v177 = vld [vmem:[%s176] ss:$0 sm:$0xff]
        %v178 = vxor.u32 %v177, 2147483648
        %v179 = vlaneseq
        %v180 = vand.u32 %v179, 127
        %vm181 = vcmp.eq.s32.totalorder %v180, 5
        %v182 = vmul.f32 %v178, %v175
        %183 = vadd.xlane.f32.xlu0 %v182
        %v184 = vpop.xlane.xlu0 %183
        %v185 = vsel %vm181, %v184, %v175
        %v186 = vrcp.pop %v118
        %v187 = vmul.f32 %v185, %v186
        %vm188 = vweird.f32 %v118
        %v189 = vsel %vm188, %v185, %v187
        %190 = vst [vmem:[%s107] sm:$0xff] %v189
        %s191 = sand.u32 %s8, 1
        %s192 = sand.u32 %s8, 1
        %s193 = smul.addr %s192, 8
        %s194 = scalar_lea.vmem [#allocation1], %s193
        %s195 = sadd.s32 %s17, %s16
        %s196 = sadd.s32 %s195, %s15
        %s197 = sadd.s32 %s196, %s14
        %s198 = smul.addr %s197, 8
        %s199 = scalar_lea.vmem %s1, %s198
        // Predicated region
        $region55: #{custom-call.7} parent=53 // pred_check
          _
        $region56: #{custom-call.7} parent=53 // pred_check_branch
          %201 = sbr.rel (0) target = $region58
        $region57: #{custom-call.7} parent=53 // pred_region
          // Predicated region
          $region59: #{custom-call.7} parent=57 // pred_check
            _
          $region60: #{custom-call.7} parent=57 // pred_check_branch
            %203 = sbr.rel (0) target = $region62
          $region61: #{custom-call.7} parent=57 // pred_region
            // Predicated region
            $region74: #{custom-call.7} parent=61 // pred_check
              _
            $region75: #{custom-call.7} parent=61 // pred_check_branch
              %218 = sbr.rel (0) target = $region77
            $region76: #{custom-call.7} parent=61 // pred_region
              loop: start=0, step=1, limit=1
              $region78: #{custom-call.7} parent=76 // loop_pre_header
                _
              $region79: #{custom-call.7} parent=76 // loop_header
                %s220 = sphi 0, %s224
                %p221 = scmp.ge.s32.totalorder %s220, 1
                %s225 = sphi %s194, %s194
                %s226 = sphi %s199, %s199
              $region80: #{custom-call.7} parent=76 // loop_header_branch
                %223 = sbr.rel (%p221) target = $region84
              $region81: #{custom-call.7} parent=76 // loop_body
                %v227 = vld [vmem:[%s225] sm:$0xff]
                %228 = vst [vmem:[%s226] sm:$0xff] %v227
              $region82: #{custom-call.7} parent=76 // loop_footer
                %s224 = sadd.s32 1, %s220
              $region83: #{custom-call.7} parent=76 // loop_footer_branch
                %219 = sbr.rel target = $region79
              $region84: #{custom-call.7} parent=76 // loop_exit
                _
            $region77: #{custom-call.7} parent=61 // pred_fallthru
              _
            // Predicated region
            $region85: #{custom-call.7} parent=61 // pred_check
              _
            $region86: #{custom-call.7} parent=61 // pred_check_branch
              %230 = sbr.rel target = $region88
            $region87: #{custom-call.7} parent=61 // pred_region
              _
            $region88: #{custom-call.7} parent=61 // pred_fallthru
              _
          $region62: #{custom-call.7} parent=57 // pred_fallthru
            _
          // Predicated region
          $region63: #{custom-call.7} parent=57 // pred_check
            _
          $region64: #{custom-call.7} parent=57 // pred_check_branch
            %205 = sbr.rel target = $region66
          $region65: #{custom-call.7} parent=57 // pred_region
            loop: start=0, step=1, limit=1
            $region67: #{custom-call.7} parent=65 // loop_pre_header
              _
            $region68: #{custom-call.7} parent=65 // loop_header
              %s208 = sphi 0, %s212
              %p209 = scmp.ge.s32.totalorder %s208, 1
              %s213 = sphi %s194, %s194
              %s214 = sphi %s199, %s199
            $region69: #{custom-call.7} parent=65 // loop_header_branch
              %211 = sbr.rel (%p209) target = $region73
            $region70: #{custom-call.7} parent=65 // loop_body
              %v215 = vld [vmem:[%s213] sm:$0xff]
              %216 = vst [vmem:[%s214] sm:$0xff] %v215
            $region71: #{custom-call.7} parent=65 // loop_footer
              %s212 = sadd.s32 1, %s208
            $region72: #{custom-call.7} parent=65 // loop_footer_branch
              %207 = sbr.rel target = $region68
            $region73: #{custom-call.7} parent=65 // loop_exit
              _
          $region66: #{custom-call.7} parent=57 // pred_fallthru
            _
        $region58: #{custom-call.7} parent=53 // pred_fallthru
          _
        %231 = vnop
      $region54: #{custom-call.7} parent=5 // pred_fallthru
        _
      %p232 = scmp.le.s32.totalorder 2, %s3
      // Predicated region
      $region89: #{custom-call.7} parent=5 // pred_check
        %p233 = pneg %p232
      $region90: #{custom-call.7} parent=5 // pred_check_branch
        %235 = sbr.rel (%p233) target = $region92
      $region91: #{custom-call.7} parent=5 // pred_region
        %s236 = ssub.s32 %s3, 2
        %s237 = sand.u32 %s9, 1
        %s238 = sand.u32 %s9, 1
        %s239 = smul.addr %s238, 8
        %s240 = scalar_lea.vmem [#allocation1], %s239
      $region92: #{custom-call.7} parent=5 // pred_fallthru
        _
    $region6: #{custom-call.7} parent=1 // loop_footer
      %s7 = sadd.s32 1, %s3
    $region7: #{custom-call.7} parent=1 // loop_footer_branch
      %2 = sbr.rel target = $region3
    $region8: #{custom-call.7} parent=1 // loop_exit
      _

// kernel: forward.1
$region0: #{forward.1}
  #allocation0 [shape = 'u32[]', space=smem, size = 0x4, offset = 0x4, fixed_abs, tag = 'smem constant byte address 0x4 - core index']
  #allocation1 [shape = 'u32[144,128]{1,0:T(1,128)}', space=vmem, size = 0x12000, scoped, tag = 'internal scratch']
  %s0 = inlined_call_operand.hbm [shape: f32[7,8,8], index: 0, kind: input, shape index: {}]
  %s1 = inlined_call_operand.hbm [shape: f32[2,8,8], index: 1, kind: input, shape index: {}]
  %s2 = inlined_call_operand.hbm [shape: f32[2,8,8], index: 2, kind: input, shape index: {}]
  %s3 = inlined_call_operand.hbm [shape: f32[2,8,8], index: 3, kind: input, shape index: {}]
  %s4 = inlined_call_operand.vmem [shape: f32[2,8,8], index: 4, kind: output, shape index: {}]
  %s5 = sld [smem:[#allocation0]]
  $region42: #{forward.1} parent=0
    _
  %s7 = ssub.s32 1, %s5
  %s8 = scalar_select 0, %s7, %s5
  $region1: #{forward.1} parent=0
    #allocation2 [shape = 'u8[28672]{0}', space=vmem, size = 0x7000, scoped, tag = 'input window, operand 0, single buffered']
    #allocation3 [shape = 's32[1]{0}', space=sflag, size = 0x4, scoped, tag = 'scoped memory for forward.1']
    #allocation4 [shape = 'u8[8192]{0}', space=vmem, size = 0x2000, scoped, tag = 'input window, operand 1, single buffered']
    #allocation5 [shape = 's32[1]{0}', space=sflag, size = 0x4, scoped, tag = 'scoped memory for forward.1']
    #allocation6 [shape = 'u8[8192]{0}', space=vmem, size = 0x2000, scoped, tag = 'input window, operand 2, single buffered']
    #allocation7 [shape = 'u8[8192]{0}', space=vmem, size = 0x2000, scoped, tag = 'input window, operand 3, single buffered']
    #allocation8 [shape = 's32[1]{0}', space=sflag, size = 0x4, scoped, tag = 'scoped memory for forward.1']
    %9 = vsyncpa [#allocation3], 0
    %10 = vsyncpa [#allocation5], 0
    %11 = vsyncpa [#allocation8], 0
    // Predicated region
    $region2: #{forward.1} parent=1 // pred_check
      _
    $region3: #{forward.1} parent=1 // pred_check_branch
      %13 = sbr.rel (0) target = $region5
    $region4: #{forward.1} parent=1 // pred_region
      %s15 = ssub.s32 896, 896
      %16 = vsyncadd [#allocation3], %s15
      %s17 = sshll.u32 [#allocation2], 4
      %s18 = int_to_ptr.vmem [resolvable:$true] %s17
      %23 = dma.hbm_to_vmem [thread:$0]  %s0, 896, %s18, [#allocation3], 128, 128, 8
    $region5: #{forward.1} parent=1 // pred_fallthru
      _
    // Predicated region
    $region6: #{forward.1} parent=1 // pred_check
      _
    $region7: #{forward.1} parent=1 // pred_check_branch
      %25 = sbr.rel (0) target = $region9
    $region8: #{forward.1} parent=1 // pred_region
      %s27 = ssub.s32 256, 256
      %28 = vsyncadd [#allocation5], %s27
      %s29 = sshll.u32 [#allocation4], 4
      %s30 = int_to_ptr.vmem [resolvable:$true] %s29
      %35 = dma.hbm_to_vmem [thread:$0]  %s1, 256, %s30, [#allocation5], 128, 128, 8
    $region9: #{forward.1} parent=1 // pred_fallthru
      _
    // Predicated region
    $region10: #{forward.1} parent=1 // pred_check
      _
    $region11: #{forward.1} parent=1 // pred_check_branch
      %37 = sbr.rel (0) target = $region13
    $region12: #{forward.1} parent=1 // pred_region
      %s39 = ssub.s32 256, 256
      %40 = vsyncadd [#allocation5], %s39
      %s41 = sshll.u32 [#allocation6], 4
      %s42 = int_to_ptr.vmem [resolvable:$true] %s41
      %47 = dma.hbm_to_vmem [thread:$0]  %s2, 256, %s42, [#allocation5], 128, 128, 8
    $region13: #{forward.1} parent=1 // pred_fallthru
      _
    // Predicated region
    $region14: #{forward.1} parent=1 // pred_check
      _
    $region15: #{forward.1} parent=1 // pred_check_branch
      %49 = sbr.rel (0) target = $region17
    $region16: #{forward.1} parent=1 // pred_region
      %s51 = ssub.s32 256, 256
      %52 = vsyncadd [#allocation8], %s51
      %s53 = sshll.u32 [#allocation7], 4
      %s54 = int_to_ptr.vmem [resolvable:$true] %s53
      %59 = dma.hbm_to_vmem [thread:$0]  %s3, 256, %s54, [#allocation8], 128, 128, 8
    $region17: #{forward.1} parent=1 // pred_fallthru
      _
    // Predicated region
    $region18: #{forward.1} parent=1 // pred_check
      _
    $region19: #{forward.1} parent=1 // pred_check_branch
      %61 = sbr.rel (0) target = $region21
    $region20: #{forward.1} parent=1 // pred_region
      %62 = dma.done [#allocation3], 896
    $region21: #{forward.1} parent=1 // pred_fallthru
      _
    // Predicated region
    $region22: #{forward.1} parent=1 // pred_check
      _
    $region23: #{forward.1} parent=1 // pred_check_branch
      %64 = sbr.rel (0) target = $region25
    $region24: #{forward.1} parent=1 // pred_region
      %65 = dma.done [#allocation5], 256
    $region25: #{forward.1} parent=1 // pred_fallthru
      _
    // Predicated region
    $region26: #{forward.1} parent=1 // pred_check
      _
    $region27: #{forward.1} parent=1 // pred_check_branch
      %67 = sbr.rel (0) target = $region29
    $region28: #{forward.1} parent=1 // pred_region
      %68 = dma.done [#allocation5], 256
    $region29: #{forward.1} parent=1 // pred_fallthru
      _
    // Predicated region
    $region30: #{forward.1} parent=1 // pred_check
      _
    $region31: #{forward.1} parent=1 // pred_check_branch
      %70 = sbr.rel (0) target = $region33
    $region32: #{forward.1} parent=1 // pred_region
      %71 = dma.done [#allocation8], 256
    $region33: #{forward.1} parent=1 // pred_fallthru
      _
    %v72 = vld [vmem:[#allocation2] sm:$0xff]
    %s73 = scalar_lea.vmem [#allocation2], 8
    %v74 = vld [vmem:[%s73] sm:$0xff]
    %s75 = scalar_lea.vmem [#allocation2], 16
    %v76 = vld [vmem:[%s75] sm:$0xff]
    %s77 = scalar_lea.vmem [#allocation2], 24
    %v78 = vld [vmem:[%s77] sm:$0xff]
    %s79 = scalar_lea.vmem [#allocation2], 32
    %v80 = vld [vmem:[%s79] sm:$0xff]
    %s81 = scalar_lea.vmem [#allocation2], 40
    %v82 = vld [vmem:[%s81] sm:$0xff]
    %s83 = scalar_lea.vmem [#allocation2], 48
    %v84 = vld [vmem:[%s83] sm:$0xff]
    %v85 = vld [vmem:[#allocation4] sm:$0xff]
    %v86 = vmul.f32 %v74, %v85
    %v87 = vadd.f32 %v72, %v86
    %v88 = vld [vmem:[#allocation6] sm:$0xff]
    %v89 = vmul.f32 %v78, %v88
    %v90 = vadd.f32 %v76, %v89
    %v91 = vld [vmem:[#allocation7] sm:$0xff]
    %v92 = vmul.f32 %v82, %v91
    %v93 = vadd.f32 %v80, %v92
    %v94 = vsub.f32 1.0, %v84
    %v95 = vmul.f32 %v90, %v94
    %v96 = vand.u32 2147483647, %v90
    %v97 = vmul.f32 %v96, %v84
    %v98 = vadd.f32 %v95, %v97
    %v99 = vand.u32 2147483647, %v93
    %vm100 = vcmask 64512
    %v102 = vsel %vm100, %v87, 0
    %104 = vmatprep.subr.mxu0 0.0
    %105 = vmatpush1.msra.mxu0 %v98
    %106 = vmatprep.subr.mxu0 0.0
    %107 = vmatpush1.msra.mxu0 0.0
    %108 = vmatprep.subr.mxu0 0.0
    %109 = vmatpush1.msra.mxu0 0.0
    %110 = vmatprep.subr.mxu0 0.0
    %111 = vmatpush1.msra.mxu0 0.0
    %112 = vmatprep.subr.mxu0 0.0
    %113 = vmatpush1.msra.mxu0 0.0
    %114 = vmatprep.subr.mxu0 0.0
    %115 = vmatpush1.msra.mxu0 0.0
    %116 = vmatprep.subr.mxu0 0.0
    %117 = vmatpush1.msra.mxu0 0.0
    %118 = vmatprep.subr.mxu0 0.0
    %119 = vmatpush1.msra.mxu0 0.0
    %120 = vmatprep.subr.mxu0 0.0
    %121 = vmatpush1.msra.mxu0 0.0
    %122 = vmatprep.subr.mxu0 0.0
    %123 = vmatpush1.msra.mxu0 0.0
    %124 = vmatprep.subr.mxu0 0.0
    %125 = vmatpush1.msra.mxu0 0.0
    %126 = vmatprep.subr.mxu0 0.0
    %127 = vmatpush1.msra.mxu0 0.0
    %128 = vmatprep.subr.mxu0 0.0
    %129 = vmatpush1.msra.mxu0 0.0
    %130 = vmatprep.subr.mxu0 0.0
    %131 = vmatpush1.msra.mxu0 0.0
    %132 = vmatprep.subr.mxu0 0.0
    %133 = vmatpush1.msra.mxu0 0.0
    %134 = vmatprep.subr.mxu0 0.0
    %135 = vmatpush1.msra.mxu0 0.0
    %136 = vmatprep.subr.mxu0 0.0
    %137 = vmatpush1.msra.mxu0 0.0
    %138 = vmatprep.subr.mxu0 0.0
    %139 = vmatpush1.msra.mxu0 0.0
    %140 = vmatprep.subr.mxu0 0.0
    %141 = vmatpush1.msra.mxu0 0.0
    %142 = vmatprep.subr.mxu0 0.0
    %143 = vmatpush1.msra.mxu0 0.0
    %144 = vmatprep.subr.mxu0 0.0
    %145 = vmatpush1.msra.mxu0 0.0
    %146 = vmatprep.subr.mxu0 0.0
    %147 = vmatpush1.msra.mxu0 0.0
    %148 = vmatprep.subr.mxu0 0.0
    %149 = vmatpush1.msra.mxu0 0.0
    %150 = vmatprep.subr.mxu0 0.0
    %151 = vmatpush1.msra.mxu0 0.0
    %152 = vmatprep.subr.mxu0 0.0
    %153 = vmatpush1.msra.mxu0 0.0
    %154 = vmatprep.subr.mxu0 0.0
    %155 = vmatpush1.msra.mxu0 0.0
    %156 = vmatprep.subr.mxu0 0.0
    %157 = vmatpush1.msra.mxu0 0.0
    %158 = vmatprep.subr.mxu0 0.0
    %159 = vmatpush1.msra.mxu0 0.0
    %160 = vmatprep.subr.mxu0 0.0
    %161 = vmatpush1.msra.mxu0 0.0
    %162 = vmatprep.subr.mxu0 0.0
    %163 = vmatpush1.msra.mxu0 0.0
    %164 = vmatprep.subr.mxu0 0.0
    %165 = vmatpush1.msra.mxu0 0.0
    %166 = vmatprep.subr.mxu0 0.0
    %167 = vmatpush1.msra.mxu0 0.0
    %168 = vmatprep.mubr.f32.mxu0 0.0
    %169 = vmatmul.mubr.f32.gmra.mrb[0].mxu0 %v102
    %v170 = vpop.f32.mrb[0].mxu0
    %v171 = vadd.f32 0.0, %v170
    %v172 = vpop.f32.mrb[0].mxu0
    %173 = vdwg.mxu0
    %v175 = vsel %vm100, %v171, 0
    %177 = vmatprep.subr.mxu0 0.0
    %178 = vmatpush1.xpose.msra.mxu0 %v102
    %179 = vmatprep.subr.mxu0 0.0
    %180 = vmatpush1.xpose.msra.mxu0 0.0
    %181 = vmatprep.subr.mxu0 0.0
    %182 = vmatpush1.xpose.msra.mxu0 0.0
    %183 = vmatprep.subr.mxu0 0.0
    %184 = vmatpush1.xpose.msra.mxu0 0.0
    %185 = vmatprep.subr.mxu0 0.0
    %186 = vmatpush1.xpose.msra.mxu0 0.0
    %187 = vmatprep.subr.mxu0 0.0
    %188 = vmatpush1.xpose.msra.mxu0 0.0
    %189 = vmatprep.subr.mxu0 0.0
    %190 = vmatpush1.xpose.msra.mxu0 0.0
    %191 = vmatprep.subr.mxu0 0.0
    %192 = vmatpush1.xpose.msra.mxu0 0.0
    %193 = vmatprep.subr.mxu0 0.0
    %194 = vmatpush1.xpose.msra.mxu0 0.0
    %195 = vmatprep.subr.mxu0 0.0
    %196 = vmatpush1.xpose.msra.mxu0 0.0
    %197 = vmatprep.subr.mxu0 0.0
    %198 = vmatpush1.xpose.msra.mxu0 0.0
    %199 = vmatprep.subr.mxu0 0.0
    %200 = vmatpush1.xpose.msra.mxu0 0.0
    %201 = vmatprep.subr.mxu0 0.0
    %202 = vmatpush1.xpose.msra.mxu0 0.0
    %203 = vmatprep.subr.mxu0 0.0
    %204 = vmatpush1.xpose.msra.mxu0 0.0
    %205 = vmatprep.subr.mxu0 0.0
    %206 = vmatpush1.xpose.msra.mxu0 0.0
    %207 = vmatprep.subr.mxu0 0.0
    %208 = vmatpush1.xpose.msra.mxu0 0.0
    %209 = vmatprep.subr.mxu0 0.0
    %210 = vmatpush1.xpose.msra.mxu0 0.0
    %211 = vmatprep.subr.mxu0 0.0
    %212 = vmatpush1.xpose.msra.mxu0 0.0
    %213 = vmatprep.subr.mxu0 0.0
    %214 = vmatpush1.xpose.msra.mxu0 0.0
    %215 = vmatprep.subr.mxu0 0.0
    %216 = vmatpush1.xpose.msra.mxu0 0.0
    %217 = vmatprep.subr.mxu0 0.0
    %218 = vmatpush1.xpose.msra.mxu0 0.0
    %219 = vmatprep.subr.mxu0 0.0
    %220 = vmatpush1.xpose.msra.mxu0 0.0
    %221 = vmatprep.subr.mxu0 0.0
    %222 = vmatpush1.xpose.msra.mxu0 0.0
    %223 = vmatprep.subr.mxu0 0.0
    %224 = vmatpush1.xpose.msra.mxu0 0.0
    %225 = vmatprep.subr.mxu0 0.0
    %226 = vmatpush1.xpose.msra.mxu0 0.0
    %227 = vmatprep.subr.mxu0 0.0
    %228 = vmatpush1.xpose.msra.mxu0 0.0
    %229 = vmatprep.subr.mxu0 0.0
    %230 = vmatpush1.xpose.msra.mxu0 0.0
    %231 = vmatprep.subr.mxu0 0.0
    %232 = vmatpush1.xpose.msra.mxu0 0.0
    %233 = vmatprep.subr.mxu0 0.0
    %234 = vmatpush1.xpose.msra.mxu0 0.0
    %235 = vmatprep.subr.mxu0 0.0
    %236 = vmatpush1.xpose.msra.mxu0 0.0
    %237 = vmatprep.subr.mxu0 0.0
    %238 = vmatpush1.xpose.msra.mxu0 0.0
    %239 = vmatprep.subr.mxu0 0.0
    %240 = vmatpush1.xpose.msra.mxu0 0.0
    %241 = vmatprep.mubr.f32.mxu0 0.0
    %242 = vmatmul.mubr.f32.gmra.mrb[0].mxu0 %v175
    %v243 = vpop.f32.mrb[0].mxu0
    %v244 = vadd.f32 %v99, %v243
    %v245 = vpop.f32.mrb[0].mxu0
    %246 = vdwg.mxu0
    %247 = vxpose.xlu0.b32.start [1/16] %v244, 128
    %248 = vxpose.xlu0.b32.cont [2/16] 0.0, 128
    %249 = vxpose.xlu0.b32.cont [3/16] 0.0, 128
    %250 = vxpose.xlu0.b32.cont [4/16] 0.0, 128
    %251 = vxpose.xlu0.b32.cont [5/16] 0.0, 128
    %252 = vxpose.xlu0.b32.cont [6/16] 0.0, 128
    %253 = vxpose.xlu0.b32.cont [7/16] 0.0, 128
    %254 = vxpose.xlu0.b32.cont [8/16] 0.0, 128
    %255 = vxpose.xlu0.b32.cont [9/16] 0.0, 128
    %256 = vxpose.xlu0.b32.cont [10/16] 0.0, 128
    %257 = vxpose.xlu0.b32.cont [11/16] 0.0, 128
    %258 = vxpose.xlu0.b32.cont [12/16] 0.0, 128
    %259 = vxpose.xlu0.b32.cont [13/16] 0.0, 128
    %260 = vxpose.xlu0.b32.cont [14/16] 0.0, 128
    %261 = vxpose.xlu0.b32.cont [15/16] 0.0, 128
    %262 = vxpose.xlu0.b32.end [16/16] 0.0, 128
    %v263 = vpop.trf.xlu0
    %v264 = vpop.trf.xlu0
    %v265 = vpop.trf.xlu0
    %v266 = vpop.trf.xlu0
    %v267 = vpop.trf.xlu0
    %v268 = vpop.trf.xlu0
    %v269 = vpop.trf.xlu0
    %v270 = vpop.trf.xlu0
    %v271 = vpop.trf.xlu0
    %v272 = vpop.trf.xlu0
    %v273 = vpop.trf.xlu0
    %v274 = vpop.trf.xlu0
    %v275 = vpop.trf.xlu0
    %v276 = vpop.trf.xlu0
    %v277 = vpop.trf.xlu0
    %v278 = vpop.trf.xlu0
    %v279 = vadd.f32 %v244, %v263
    %v280 = vmul.f32 %v279, 0.5
    %281 = vst.msk [vmem:[%s4] sm:$0xff] %vm100, %v280
    %s282 = scalar_lea.vmem [#allocation4], 8
    %v283 = vld [vmem:[%s282] sm:$0xff]
    %v284 = vmul.f32 %v74, %v283
    %v285 = vadd.f32 %v72, %v284
    %s286 = scalar_lea.vmem [#allocation6], 8
    %v287 = vld [vmem:[%s286] sm:$0xff]
    %v288 = vmul.f32 %v78, %v287
    %v289 = vadd.f32 %v76, %v288
    %s290 = scalar_lea.vmem [#allocation7], 8
    %v291 = vld [vmem:[%s290] sm:$0xff]
    %v292 = vmul.f32 %v82, %v291
    %v293 = vadd.f32 %v80, %v292
    %v294 = vmul.f32 %v289, %v94
    %v295 = vand.u32 2147483647, %v289
    %v296 = vmul.f32 %v295, %v84
    %v297 = vadd.f32 %v294, %v296
    %v298 = vand.u32 2147483647, %v293
    %v300 = vsel %vm100, %v285, 0
    %302 = vmatprep.subr.mxu0 0.0
    %303 = vmatpush1.msra.mxu0 %v297
    %304 = vmatprep.subr.mxu0 0.0
    %305 = vmatpush1.msra.mxu0 0.0
    %306 = vmatprep.subr.mxu0 0.0
    %307 = vmatpush1.msra.mxu0 0.0
    %308 = vmatprep.subr.mxu0 0.0
    %309 = vmatpush1.msra.mxu0 0.0
    %310 = vmatprep.subr.mxu0 0.0
    %311 = vmatpush1.msra.mxu0 0.0
    %312 = vmatprep.subr.mxu0 0.0
    %313 = vmatpush1.msra.mxu0 0.0
    %314 = vmatprep.subr.mxu0 0.0
    %315 = vmatpush1.msra.mxu0 0.0
    %316 = vmatprep.subr.mxu0 0.0
    %317 = vmatpush1.msra.mxu0 0.0
    %318 = vmatprep.subr.mxu0 0.0
    %319 = vmatpush1.msra.mxu0 0.0
    %320 = vmatprep.subr.mxu0 0.0
    %321 = vmatpush1.msra.mxu0 0.0
    %322 = vmatprep.subr.mxu0 0.0
    %323 = vmatpush1.msra.mxu0 0.0
    %324 = vmatprep.subr.mxu0 0.0
    %325 = vmatpush1.msra.mxu0 0.0
    %326 = vmatprep.subr.mxu0 0.0
    %327 = vmatpush1.msra.mxu0 0.0
    %328 = vmatprep.subr.mxu0 0.0
    %329 = vmatpush1.msra.mxu0 0.0
    %330 = vmatprep.subr.mxu0 0.0
    %331 = vmatpush1.msra.mxu0 0.0
    %332 = vmatprep.subr.mxu0 0.0
    %333 = vmatpush1.msra.mxu0 0.0
    %334 = vmatprep.subr.mxu0 0.0
    %335 = vmatpush1.msra.mxu0 0.0
    %336 = vmatprep.subr.mxu0 0.0
    %337 = vmatpush1.msra.mxu0 0.0
    %338 = vmatprep.subr.mxu0 0.0
    %339 = vmatpush1.msra.mxu0 0.0
    %340 = vmatprep.subr.mxu0 0.0
    %341 = vmatpush1.msra.mxu0 0.0
    %342 = vmatprep.subr.mxu0 0.0
    %343 = vmatpush1.msra.mxu0 0.0
    %344 = vmatprep.subr.mxu0 0.0
    %345 = vmatpush1.msra.mxu0 0.0
    %346 = vmatprep.subr.mxu0 0.0
    %347 = vmatpush1.msra.mxu0 0.0
    %348 = vmatprep.subr.mxu0 0.0
    %349 = vmatpush1.msra.mxu0 0.0
    %350 = vmatprep.subr.mxu0 0.0
    %351 = vmatpush1.msra.mxu0 0.0
    %352 = vmatprep.subr.mxu0 0.0
    %353 = vmatpush1.msra.mxu0 0.0
    %354 = vmatprep.subr.mxu0 0.0
    %355 = vmatpush1.msra.mxu0 0.0
    %356 = vmatprep.subr.mxu0 0.0
    %357 = vmatpush1.msra.mxu0 0.0
    %358 = vmatprep.subr.mxu0 0.0
    %359 = vmatpush1.msra.mxu0 0.0
    %360 = vmatprep.subr.mxu0 0.0
    %361 = vmatpush1.msra.mxu0 0.0
    %362 = vmatprep.subr.mxu0 0.0
    %363 = vmatpush1.msra.mxu0 0.0
    %364 = vmatprep.subr.mxu0 0.0
    %365 = vmatpush1.msra.mxu0 0.0
    %366 = vmatprep.mubr.f32.mxu0 0.0
    %367 = vmatmul.mubr.f32.gmra.mrb[0].mxu0 %v300
    %v368 = vpop.f32.mrb[0].mxu0
    %v369 = vadd.f32 0.0, %v368
    %v370 = vpop.f32.mrb[0].mxu0
    %371 = vdwg.mxu0
    %v373 = vsel %vm100, %v369, 0
    %375 = vmatprep.subr.mxu0 0.0
    %376 = vmatpush1.xpose.msra.mxu0 %v300
    %377 = vmatprep.subr.mxu0 0.0
    %378 = vmatpush1.xpose.msra.mxu0 0.0
    %379 = vmatprep.subr.mxu0 0.0
    %380 = vmatpush1.xpose.msra.mxu0 0.0
    %381 = vmatprep.subr.mxu0 0.0
    %382 = vmatpush1.xpose.msra.mxu0 0.0
    %383 = vmatprep.subr.mxu0 0.0
    %384 = vmatpush1.xpose.msra.mxu0 0.0
    %385 = vmatprep.subr.mxu0 0.0
    %386 = vmatpush1.xpose.msra.mxu0 0.0
    %387 = vmatprep.subr.mxu0 0.0
    %388 = vmatpush1.xpose.msra.mxu0 0.0
    %389 = vmatprep.subr.mxu0 0.0
    %390 = vmatpush1.xpose.msra.mxu0 0.0
    %391 = vmatprep.subr.mxu0 0.0
    %392 = vmatpush1.xpose.msra.mxu0 0.0
    %393 = vmatprep.subr.mxu0 0.0
    %394 = vmatpush1.xpose.msra.mxu0 0.0
    %395 = vmatprep.subr.mxu0 0.0
    %396 = vmatpush1.xpose.msra.mxu0 0.0
    %397 = vmatprep.subr.mxu0 0.0
    %398 = vmatpush1.xpose.msra.mxu0 0.0
    %399 = vmatprep.subr.mxu0 0.0
    %400 = vmatpush1.xpose.msra.mxu0 0.0
    %401 = vmatprep.subr.mxu0 0.0
    %402 = vmatpush1.xpose.msra.mxu0 0.0
    %403 = vmatprep.subr.mxu0 0.0
    %404 = vmatpush1.xpose.msra.mxu0 0.0
    %405 = vmatprep.subr.mxu0 0.0
    %406 = vmatpush1.xpose.msra.mxu0 0.0
    %407 = vmatprep.subr.mxu0 0.0
    %408 = vmatpush1.xpose.msra.mxu0 0.0
    %409 = vmatprep.subr.mxu0 0.0
    %410 = vmatpush1.xpose.msra.mxu0 0.0
    %411 = vmatprep.subr.mxu0 0.0
    %412 = vmatpush1.xpose.msra.mxu0 0.0
    %413 = vmatprep.subr.mxu0 0.0
    %414 = vmatpush1.xpose.msra.mxu0 0.0
    %415 = vmatprep.subr.mxu0 0.0
    %416 = vmatpush1.xpose.msra.mxu0 0.0
    %417 = vmatprep.subr.mxu0 0.0
    %418 = vmatpush1.xpose.msra.mxu0 0.0
    %419 = vmatprep.subr.mxu0 0.0
    %420 = vmatpush1.xpose.msra.mxu0 0.0
    %421 = vmatprep.subr.mxu0 0.0
    %422 = vmatpush1.xpose.msra.mxu0 0.0
    %423 = vmatprep.subr.mxu0 0.0
    %424 = vmatpush1.xpose.msra.mxu0 0.0
    %425 = vmatprep.subr.mxu0 0.0
    %426 = vmatpush1.xpose.msra.mxu0 0.0
    %427 = vmatprep.subr.mxu0 0.0
    %428 = vmatpush1.xpose.msra.mxu0 0.0
    %429 = vmatprep.subr.mxu0 0.0
    %430 = vmatpush1.xpose.msra.mxu0 0.0
    %431 = vmatprep.subr.mxu0 0.0
    %432 = vmatpush1.xpose.msra.mxu0 0.0
    %433 = vmatprep.subr.mxu0 0.0
    %434 = vmatpush1.xpose.msra.mxu0 0.0
    %435 = vmatprep.subr.mxu0 0.0
    %436 = vmatpush1.xpose.msra.mxu0 0.0
    %437 = vmatprep.subr.mxu0 0.0
    %438 = vmatpush1.xpose.msra.mxu0 0.0
    %439 = vmatprep.mubr.f32.mxu0 0.0
    %440 = vmatmul.mubr.f32.gmra.mrb[0].mxu0 %v373
    %v441 = vpop.f32.mrb[0].mxu0
    %v442 = vadd.f32 %v298, %v441
    %v443 = vpop.f32.mrb[0].mxu0
    %444 = vdwg.mxu0
    %445 = vxpose.xlu0.b32.start [1/16] %v442, 128
    %446 = vxpose.xlu0.b32.cont [2/16] 0.0, 128
    %447 = vxpose.xlu0.b32.cont [3/16] 0.0, 128
    %448 = vxpose.xlu0.b32.cont [4/16] 0.0, 128
    %449 = vxpose.xlu0.b32.cont [5/16] 0.0, 128
    %450 = vxpose.xlu0.b32.cont [6/16] 0.0, 128
    %451 = vxpose.xlu0.b32.cont [7/16] 0.0, 128
    %452 = vxpose.xlu0.b32.cont [8/16] 0.0, 128
    %453 = vxpose.xlu0.b32.cont [9/16] 0.0, 128
    %454 = vxpose.xlu0.b32.cont [10/16] 0.0, 128
    %455 = vxpose.xlu0.b32.cont [11/16] 0.0, 128
    %456 = vxpose.xlu0.b32.cont [12/16] 0.0, 128
    %457 = vxpose.xlu0.b32.cont [13/16] 0.0, 128
    %458 = vxpose.xlu0.b32.cont [14/16] 0.0, 128
    %459 = vxpose.xlu0.b32.cont [15/16] 0.0, 128
    %460 = vxpose.xlu0.b32.end [16/16] 0.0, 128
    %v461 = vpop.trf.xlu0
    %v462 = vpop.trf.xlu0
    %v463 = vpop.trf.xlu0
    %v464 = vpop.trf.xlu0
    %v465 = vpop.trf.xlu0
    %v466 = vpop.trf.xlu0
    %v467 = vpop.trf.xlu0
    %v468 = vpop.trf.xlu0
    %v469 = vpop.trf.xlu0
    %v470 = vpop.trf.xlu0
    %v471 = vpop.trf.xlu0
    %v472 = vpop.trf.xlu0
    %v473 = vpop.trf.xlu0
    %v474 = vpop.trf.xlu0
    %v475 = vpop.trf.xlu0
    %v476 = vpop.trf.xlu0
    %v477 = vadd.f32 %v442, %v461
    %v478 = vmul.f32 %v477, 0.5
    %s479 = scalar_lea.vmem %s4, 8
    %480 = vst.msk [vmem:[%s479] sm:$0xff] %vm100, %v478
    // Predicated region
    $region34: #{forward.1} parent=1 // pred_check
      _
    $region35: #{forward.1} parent=1 // pred_check_branch
      %482 = sbr.rel (0) target = $region37
    $region36: #{forward.1} parent=1 // pred_region
      _
    $region37: #{forward.1} parent=1 // pred_fallthru
      _
    // Predicated region
    $region38: #{forward.1} parent=1 // pred_check
      _
    $region39: #{forward.1} parent=1 // pred_check_branch
      %484 = sbr.rel (0) target = $region41
    $region40: #{forward.1} parent=1 // pred_region
      _
    $region41: #{forward.1} parent=1 // pred_fallthru
      _
    %485 = vsyncpa [#allocation3], 1
    %486 = vsyncpa [#allocation5], 1
    %487 = vsyncpa [#allocation8], 1

</llo_original>
